<compile_context>
chip_gen: v7x
topology: tpu7x:2x2x1
jax: 0.10.0
libtpu: 0.0.40
codegen_flags: <defaults>
</compile_context>

<pallas_src>
import functools

import jax
import jax.numpy as jnp
from jax.experimental import pallas as pl
from jax.experimental.pallas import tpu as pltpu

_LANE = 128
_SUB = 8
_MAX_BLOCK_ROWS = 2048  # (2048,128) f32 = 1 MiB/block/input; safe on v5e/v6e/v7x


def _bce_partial_kernel(x_ref, t_ref, o_ref, *, block_rows, tail):
    """Per-block BCE-with-logits partial sums, reduced to an (8,128) slab."""
    x = x_ref[...].astype(jnp.float32)
    t = t_ref[...].astype(jnp.float32)

    # Numerically stable BCE-with-logits (matches torch.nn.BCEWithLogitsLoss):
    #   loss = max(x, 0) - x * t + log(1 + exp(-|x|))
    loss = jnp.maximum(x, 0.0) - x * t + jnp.log1p(jnp.exp(-jnp.abs(x)))

    block_elems = block_rows * _LANE
    if tail < block_elems:
        # Only needed when the last block is ragged / padded. `tail` is the
        # (static) number of valid elements in that final block; all other
        # blocks are fully valid, expressed via the (i < last) predicate so
        # there is no branching and no extra HBM traffic.
        i = pl.program_id(0)
        last = pl.num_programs(0) - 1
        row = jax.lax.broadcasted_iota(jnp.int32, loss.shape, 0)
        lane = jax.lax.broadcasted_iota(jnp.int32, loss.shape, 1)
        local = row * _LANE + lane
        loss = jnp.where((i < last) | (local < tail), loss, 0.0)

    # Keep the per-block reduction vreg-shaped: pure VPU adds across (8,128)
    # tiles; the single cross-lane reduce happens once in the tiny wrapper sum.
    partial = jnp.sum(loss.reshape(block_rows // _SUB, _SUB, _LANE), axis=0)
    o_ref[0] = partial


def bce_loss_seg(inputs, targets):
    """Pallas equivalent of BCELoss_seg.forward(inputs, targets)."""
    assert inputs.shape == targets.shape
    n = int(inputs.size)

    # Flatten in native dtype (upcast to f32 happens inside the kernel, so
    # bf16 inputs halve HBM bytes for free).
    x = jnp.ravel(inputs)
    t = jnp.ravel(targets)

    tile = _SUB * _LANE  # 1024
    rem = n % tile
    if rem:
        # Rare ragged case only: minimal zero-pad so the (rows, 128) reshape is
        # valid and rows is a multiple of 8. Padded elements are masked
        # in-kernel via `tail`. (Aligned sizes take the copy-free path.)
        pad = tile - rem
        x = jnp.pad(x, (0, pad))
        t = jnp.pad(t, (0, pad))
        n_pad = n + pad
    else:
        n_pad = n

    rows = n_pad // _LANE                       # multiple of 8
    block_rows = min(_MAX_BLOCK_ROWS, rows)     # multiple of 8
    num_blocks = (rows + block_rows - 1) // block_rows
    tail = n - (num_blocks - 1) * block_rows * _LANE  # valid elems in last block

    x2 = x.reshape(rows, _LANE)
    t2 = t.reshape(rows, _LANE)

    partials = pl.pallas_call(
        functools.partial(_bce_partial_kernel, block_rows=block_rows, tail=tail),
        out_shape=jax.ShapeDtypeStruct((num_blocks, _SUB, _LANE), jnp.float32),
        grid_spec=pltpu.PrefetchScalarGridSpec(
            num_scalar_prefetch=0,
            grid=(num_blocks,),
            in_specs=[
                pl.BlockSpec((block_rows, _LANE), lambda i: (i, 0)),
                pl.BlockSpec((block_rows, _LANE), lambda i: (i, 0)),
            ],
            out_specs=pl.BlockSpec((1, _SUB, _LANE), lambda i: (i, 0, 0)),
        ),
        compiler_params=pltpu.CompilerParams(
            # Independent blocks -> shard across both TensorCores on v7x.
            dimension_semantics=("parallel",),
        ),
    )(x2, t2)

    # Tiny final reduction + mean scale (num_blocks * 4 KiB of partials).
    return jnp.sum(partials) / n


def _reference_bce_with_logits(inputs, targets):
    x = jnp.ravel(inputs).astype(jnp.float32)
    t = jnp.ravel(targets).astype(jnp.float32)
    loss = jnp.maximum(x, 0.0) - x * t + jnp.log1p(jnp.exp(-jnp.abs(x)))
    return jnp.mean(loss)


if __name__ == "__main__":
    key = jax.random.PRNGKey(0)
    k1, k2 = jax.random.split(key)

    # Small NCHW-shaped logits and binary targets (segmentation style).
    B, C, H, W = 2, 4, 16, 16
    logits = jax.random.normal(k1, (B, C, H, W), dtype=jnp.float32)
    targets = (jax.random.uniform(k2, (B, C, H, W)) > 0.5).astype(jnp.float32)

    loss = bce_loss_seg(logits, targets)
    jax.block_until_ready(loss)

    ref = _reference_bce_with_logits(logits, targets)
    assert jnp.allclose(loss, ref, atol=1e-5, rtol=1e-5), (loss, ref)

    print("KERNEL_OK")
</pallas_src>

<mosaic_0001>
module attributes {stable_mosaic.version = 11 : i64} {
  func.func @_bce_partial_kernel(%arg0: i32, %arg1: memref<16x128xf32, #tpu.memory_space<vmem>>, %arg2: memref<16x128xf32, #tpu.memory_space<vmem>>, %arg3: memref<1x8x128xf32, #tpu.memory_space<vmem>>) attributes {dimension_semantics = [#tpu.dimension_semantics<parallel>], iteration_bounds = array<i64: 1>, scalar_prefetch = 0 : i64, scratch_operands = 0 : i64, tpu.core_type = #tpu.core_type<tc>, window_params = [{transform_indices = @transform_0, window_bounds = array<i64: 16, 128>}, {transform_indices = @transform_1, window_bounds = array<i64: 16, 128>}, {transform_indices = @transform_2, window_bounds = array<i64: 1, 8, 128>}]} {
    %c0 = arith.constant 0 : index
    %c0_0 = arith.constant 0 : index
    %0 = vector.load %arg1[%c0, %c0_0] : memref<16x128xf32, #tpu.memory_space<vmem>>, vector<16x128xf32>
    %c0_1 = arith.constant 0 : index
    %c0_2 = arith.constant 0 : index
    %1 = vector.load %arg2[%c0_1, %c0_2] : memref<16x128xf32, #tpu.memory_space<vmem>>, vector<16x128xf32>
    %cst = arith.constant 0.000000e+00 : f32
    %2 = vector.broadcast %cst : f32 to vector<16x128xf32>
    %3 = arith.maximumf %0, %2 : vector<16x128xf32>
    %4 = arith.mulf %0, %1 : vector<16x128xf32>
    %5 = arith.subf %3, %4 : vector<16x128xf32>
    %6 = math.absf %0 : vector<16x128xf32>
    %cst_3 = arith.constant 0.000000e+00 : f32
    %7 = vector.broadcast %cst_3 : f32 to vector<16x128xf32>
    %8 = arith.subf %7, %6 : vector<16x128xf32>
    %9 = math.exp %8 : vector<16x128xf32>
    %10 = math.log1p %9 : vector<16x128xf32>
    %11 = arith.addf %5, %10 : vector<16x128xf32>
    %12 = vector.shape_cast %11 : vector<16x128xf32> to vector<2x8x128xf32>
    %cst_4 = arith.constant dense<0.000000e+00> : vector<8x128xf32>
    %13 = vector.multi_reduction <add>, %12, %cst_4 [0] : vector<2x8x128xf32> to vector<8x128xf32>
    %c0_5 = arith.constant 0 : index
    %c0_6 = arith.constant 0 : index
    %c0_7 = arith.constant 0 : index
    %14 = vector.load %arg3[%c0_5, %c0_6, %c0_7] : memref<1x8x128xf32, #tpu.memory_space<vmem>>, vector<1x8x128xf32>
    %15 = vector.shape_cast %14 : vector<1x8x128xf32> to vector<8x128xf32>
    %16 = vector.shape_cast %13 : vector<8x128xf32> to vector<1x8x128xf32>
    tpu.vector_store %arg3[%c0_5, %c0_6, %c0_7], %16 {strides = array<i32>} : memref<1x8x128xf32, #tpu.memory_space<vmem>>, vector<1x8x128xf32>,
    return
  }
  func.func @transform_0(%arg0: i32) -> (i32, i32) {
    %c0_i32 = arith.constant 0 : i32
    %c0_i32_0 = arith.constant 0 : i32
    return %arg0, %c0_i32 : i32, i32
  }
  func.func @transform_1(%arg0: i32) -> (i32, i32) {
    %c0_i32 = arith.constant 0 : i32
    %c0_i32_0 = arith.constant 0 : i32
    return %arg0, %c0_i32 : i32, i32
  }
  func.func @transform_2(%arg0: i32) -> (i32, i32, i32) {
    %c0_i32 = arith.constant 0 : i32
    %c0_i32_0 = arith.constant 0 : i32
    %c0_i32_1 = arith.constant 0 : i32
    return %arg0, %c0_i32, %c0_i32_0 : i32, i32, i32
  }
}

</mosaic_0001>

<llo_original>
// kernel: tpu_custom_call.1
$region0: #{tpu_custom_call.1}
  #allocation0 [shape = 'u32[]', space=smem, size = 0x4, offset = 0x4, fixed_abs, tag = 'smem constant byte address 0x4 - core index']
  #allocation1 [shape = 'u32[144,128]{1,0:T(1,128)}', space=vmem, size = 0x12000, scoped, tag = 'internal scratch']
  %s0 = inlined_call_operand.hbm [shape: f32[16,128], index: 0, kind: input, shape index: {}]
  %s1 = inlined_call_operand.hbm [shape: f32[16,128], index: 1, kind: input, shape index: {}]
  %s2 = inlined_call_operand.hbm [shape: f32[1,8,128], index: 2, kind: output, shape index: {}]
  %s3 = sld [smem:[#allocation0]]
  $region26: #{tpu_custom_call.1} parent=0
    _
  %s5 = ssub.s32 1, %s3
  %s6 = scalar_select 0, %s5, %s3
  $region1: #{tpu_custom_call.1} parent=0
    #allocation2 [shape = 'u8[8192]{0}', space=vmem, size = 0x2000, scoped, tag = 'input window, operand 0, single buffered']
    #allocation3 [shape = 's32[1]{0}', space=sflag, size = 0x4, scoped, tag = 'scoped memory for tpu_custom_call.1']
    #allocation4 [shape = 's32[1]{0}', space=sflag, size = 0x4, scoped, tag = 'scoped memory for tpu_custom_call.1']
    #allocation5 [shape = 'u8[8192]{0}', space=vmem, size = 0x2000, scoped, tag = 'input window, operand 1, single buffered']
    #allocation6 [shape = 's32[1]{0}', space=sflag, size = 0x4, scoped, tag = 'scoped memory for tpu_custom_call.1']
    #allocation7 [shape = 'u8[4096]{0}', space=vmem, size = 0x1000, scoped, tag = 'output window, operand 0, single buffered']
    %7 = vsyncpa [#allocation3], 0
    %8 = vsyncpa [#allocation6], 0
    %9 = vsyncpa [#allocation4], 0
    // Predicated region
    $region2: #{tpu_custom_call.1} parent=1 // pred_check
      _
    $region3: #{tpu_custom_call.1} parent=1 // pred_check_branch
      %11 = sbr.rel (0) target = $region5
    $region4: #{tpu_custom_call.1} parent=1 // pred_region
      %s13 = ssub.s32 256, 256
      %14 = vsyncadd [#allocation3], %s13
      %s15 = sshll.u32 [#allocation2], 4
      %s16 = int_to_ptr.vmem [resolvable:$true] %s15
      %21 = dma.hbm_to_vmem [thread:$0]  %s0, 256, %s16, [#allocation3], 128, 128, 8
    $region5: #{tpu_custom_call.1} parent=1 // pred_fallthru
      _
    // Predicated region
    $region6: #{tpu_custom_call.1} parent=1 // pred_check
      _
    $region7: #{tpu_custom_call.1} parent=1 // pred_check_branch
      %23 = sbr.rel (0) target = $region9
    $region8: #{tpu_custom_call.1} parent=1 // pred_region
      %s25 = ssub.s32 256, 256
      %26 = vsyncadd [#allocation6], %s25
      %s27 = sshll.u32 [#allocation5], 4
      %s28 = int_to_ptr.vmem [resolvable:$true] %s27
      %33 = dma.hbm_to_vmem [thread:$0]  %s1, 256, %s28, [#allocation6], 128, 128, 8
    $region9: #{tpu_custom_call.1} parent=1 // pred_fallthru
      _
    // Predicated region
    $region10: #{tpu_custom_call.1} parent=1 // pred_check
      _
    $region11: #{tpu_custom_call.1} parent=1 // pred_check_branch
      %35 = sbr.rel (0) target = $region13
    $region12: #{tpu_custom_call.1} parent=1 // pred_region
      %36 = dma.done [#allocation3], 256
    $region13: #{tpu_custom_call.1} parent=1 // pred_fallthru
      _
    // Predicated region
    $region14: #{tpu_custom_call.1} parent=1 // pred_check
      _
    $region15: #{tpu_custom_call.1} parent=1 // pred_check_branch
      %38 = sbr.rel (0) target = $region17
    $region16: #{tpu_custom_call.1} parent=1 // pred_region
      %39 = dma.done [#allocation6], 256
    $region17: #{tpu_custom_call.1} parent=1 // pred_fallthru
      _
    %v40 = vld [vmem:[#allocation2] sm:$0xff]
    %v41 = vld [vmem:[#allocation2 + $0x8] sm:$0xff]
    %v42 = vld [vmem:[#allocation5] sm:$0xff]
    %v43 = vld [vmem:[#allocation5 + $0x8] sm:$0xff]
    %v44 = vmax.f32 %v40, 0.0
    %v45 = vmax.f32 %v41, 0.0
    %v46 = vmul.f32 %v40, %v42
    %v47 = vmul.f32 %v41, %v43
    %v48 = vsub.f32 %v44, %v46
    %v49 = vsub.f32 %v45, %v47
    %v50 = vand.u32 2147483647, %v40
    %v51 = vand.u32 2147483647, %v41
    %v52 = vsub.f32 0.0, %v50
    %v53 = vsub.f32 0.0, %v51
    %v54 = vmul.f32 %v52, 1.442695
    %v55 = vpow.pop %v54
    %v56 = vmul.f32 %v53, 1.442695
    %v57 = vpow.pop %v56
    %v58 = vadd.f32 %v55, 1.0
    %v59 = vlog2.pop %v58
    %v60 = vmul.f32 %v59, 0.6931472
    %v61 = vmul.f32 -0.5, %v55
    %v62 = vadd.f32 %v61, 1.0
    %v63 = vmul.f32 %v62, %v55
    %v64 = vand.u32 2147483647, %v55
    %vm65 = vcmp.lt.f32.partialorder %v64, 0.0004427343
    %v66 = vsel %vm65, %v63, %v60
    %v67 = vadd.f32 %v57, 1.0
    %v68 = vlog2.pop %v67
    %v69 = vmul.f32 %v68, 0.6931472
    %v70 = vmul.f32 -0.5, %v57
    %v71 = vadd.f32 %v70, 1.0
    %v72 = vmul.f32 %v71, %v57
    %v73 = vand.u32 2147483647, %v57
    %vm74 = vcmp.lt.f32.partialorder %v73, 0.0004427343
    %v75 = vsel %vm74, %v72, %v69
    %v76 = vadd.f32 %v48, %v66
    %v77 = vadd.f32 %v49, %v75
    %v78 = vadd.f32 %v76, %v77
    %79 = vst [vmem:[#allocation7] sm:$0xff] %v78
    // Predicated region
    $region18: #{tpu_custom_call.1} parent=1 // pred_check
      _
    $region19: #{tpu_custom_call.1} parent=1 // pred_check_branch
      %81 = sbr.rel (0) target = $region21
    $region20: #{tpu_custom_call.1} parent=1 // pred_region
      %s83 = ssub.s32 128, 128
      %84 = vsyncadd [#allocation4], %s83
      %s86 = sshll.u32 [#allocation7], 4
      %s87 = int_to_ptr.vmem [resolvable:$true] %s86
      %89 = dma.vmem_to_hbm [thread:$0]  %s87, 128, %s2, [#allocation4]
    $region21: #{tpu_custom_call.1} parent=1 // pred_fallthru
      _
    // Predicated region
    $region22: #{tpu_custom_call.1} parent=1 // pred_check
      _
    $region23: #{tpu_custom_call.1} parent=1 // pred_check_branch
      %91 = sbr.rel (0) target = $region25
    $region24: #{tpu_custom_call.1} parent=1 // pred_region
      %92 = dma.done [#allocation4], 128
    $region25: #{tpu_custom_call.1} parent=1 // pred_fallthru
      _
    %93 = vsyncpa [#allocation3], 1
    %94 = vsyncpa [#allocation6], 1
    %95 = vsyncpa [#allocation4], 1

</llo_original>
